<compile_context>
chip_gen: v7x
topology: tpu7x:2x2x1
jax: 0.10.0
libtpu: 0.0.40
codegen_flags: <defaults>
</compile_context>

<pallas_src>
import functools

import jax
import jax.numpy as jnp
import numpy as np
from jax import lax
from jax.experimental import pallas as pl
from jax.experimental.pallas import tpu as pltpu


def _pair(x):
    if isinstance(x, tuple):
        return x
    return (x, x)


# Stay comfortably under v5e's ~16 MiB default scoped-VMEM limit so the common
# path never needs vmem_limit_bytes at all.
_SAFE_VMEM_BYTES = 12 * 1024 * 1024

# Squeezed() keeps kernel refs natively (cb, th, W); fall back to None on old jax.
_SQZ = pl.Squeezed() if hasattr(pl, "Squeezed") else None


def _sgk_kernel(f1_ref, f2w_ref, o_ref, *, H, W, KH, KW, PH, PW, TH,
                channel_wise):
    """One (batch, channel-block, H-tile) step.

    f1_ref : (cb, TH, W)                 feature1 tile
    f2w_ref: (cb, TH+2*PH, W+2*PW)       zero-padded feature2 halo window
    o_ref  : (cb, TH, W)
    """
    hi = pl.program_id(2)

    f1 = f1_ref[...].astype(jnp.float32)
    f2w = f2w_ref[...].astype(jnp.float32)

    # In-kernel boundary masks: global pixel coordinates of this tile.
    gy = lax.broadcasted_iota(jnp.int32, (TH, W), 0) + hi * TH
    gx = lax.broadcasted_iota(jnp.int32, (TH, W), 1)
    row_ok = {dy: (gy + dy >= 0) & (gy + dy < H) for dy in range(-PH, PH + 1)}
    col_ok = {dx: (gx + dx >= 0) & (gx + dx < W) for dx in range(-PW, PW + 1)}

    if not channel_wise:
        # D = |f1|^2 + |f2s|^2 - 2<f1, f2s>: squared norms hoisted out of the
        # 9-tap loop. Channel is a leading vreg-batch axis -> reduces are VALU adds.
        s1 = jnp.sum(f1 * f1, axis=0)            # (TH, W)
        s2w = jnp.sum(f2w * f2w, axis=0)         # (TH+2PH, W+2PW)

    wsum = None
    for ky in range(KH):
        dy = PH - ky
        for kx in range(KW):
            dx = PW - kx
            r0, c0 = PH + dy, PW + dx
            # Tap shift = static slice into the halo window (no XLU roll).
            f2s = f2w[:, r0:r0 + TH, c0:c0 + W]              # (cb, TH, W)
            if channel_wise:
                d = (f1 - f2s) ** 2                           # (cb, TH, W)
            else:
                cross = jnp.sum(f1 * f2s, axis=0)             # (TH, W)
                d = s1 + s2w[r0:r0 + TH, c0:c0 + W] - 2.0 * cross
            g = jnp.exp(-0.5 * d)
            if not (dy == 0 and dx == 0):                     # center tap always valid
                g = jnp.where(row_ok[dy] & col_ok[dx], g, 0.0)
            wsum = g if wsum is None else wsum + g

    # gather form: out = f1 * (sum of masked gaussian tap weights)
    o_ref[...] = (f1 * wsum).astype(o_ref.dtype)


def _divisor_tiles(n, step=8):
    """Multiples of `step` that divide n, plus n itself, descending."""
    cands = {n}
    for t in range(step, n, step):
        if n % t == 0:
            cands.add(t)
    return sorted(cands, reverse=True)


def _footprint_bytes(cb, th, W, PH, PW, itemsize, channel_wise):
    hw = th * W
    hw2 = (th + 2 * PH) * (W + 2 * PW)
    io = 2 * cb * (2 * hw + hw2) * itemsize          # double-buffered f1/f2win/out
    if channel_wise:
        temps = cb * (4 * hw + hw2) * 4              # f1/f2w casts + d/g/wsum
    else:
        temps = (cb * (hw + hw2) + 6 * hw + hw2) * 4
    return io + temps


def _choose_tiles(N, C, H, W, PH, PW, itemsize, channel_wise, tile_h, tile_c):
    th_cands = _divisor_tiles(H) if tile_h is None else [tile_h]
    if channel_wise:
        cb_cands = _divisor_tiles(C) if tile_c is None else [tile_c]
    else:
        cb_cands = [C]   # channel reduction needs all channels in one block

    best = None
    for cb in cb_cands:                       # largest channel block first
        for th in th_cands:                   # then largest H tile that fits
            if _footprint_bytes(cb, th, W, PH, PW, itemsize,
                                channel_wise) <= _SAFE_VMEM_BYTES:
                best = (cb, th)
                break
        if best is not None:
            break
    if best is None:                          # nothing fits -> smallest tiles
        best = (cb_cands[-1], th_cands[-1])
    cb, th = best

    # v7x megacore: ensure >= 2 parallel grid blocks when we can split H further.
    if tile_h is None and N * (C // cb) * (H // th) < 2:
        smaller = [t for t in th_cands if t < th]
        if smaller:
            th = smaller[0]

    fp = _footprint_bytes(cb, th, W, PH, PW, itemsize, channel_wise)
    return cb, th, fp


def supervised_gauss_kernel2d(feature1, feature2, kernel_size=3, stride=1,
                              padding=1, dilation=1, channel_wise=False,
                              tile_h=None, tile_c=None):
    kh, kw = _pair(kernel_size)
    sh, sw = _pair(stride)
    ph, pw = _pair(padding)
    dh, dw = _pair(dilation)
    assert (sh, sw) == (1, 1) and (dh, dw) == (1, 1), (
        "only stride=1, dilation=1 supported")
    N, C, H, W = feature1.shape
    assert feature2.shape == feature1.shape
    # unfold output count must equal H*W for the module's .view to be valid
    assert 2 * ph == kh - 1 and 2 * pw == kw - 1

    itemsize = np.dtype(feature1.dtype).itemsize
    cb, th, fp = _choose_tiles(N, C, H, W, ph, pw, itemsize, channel_wise,
                               tile_h, tile_c)
    assert C % cb == 0 and H % th == 0
    assert th == H or th % 8 == 0, "H tile must be a multiple of 8 or full H"
    nc = C // cb
    n_ht = H // th

    # Pre-windowed, zero-padded feature2 halo tiles:
    #   f2_win[n, c, t] = pad(f2)[n, c, t*th : t*th + th + 2*ph, :]   (W padded by pw)
    # Non-overlapping BlockSpec blocks then carry the overlapping halos; cost is
    # one cheap XLA copy of ~((th+2ph)/th) x f2.
    f2p = jnp.pad(feature2, ((0, 0), (0, 0), (ph, ph), (pw, pw)))
    f2_win = jnp.stack(
        [f2p[:, :, t * th: t * th + th + 2 * ph, :] for t in range(n_ht)],
        axis=2)                       # (N, C, n_ht, th+2ph, W+2pw)

    kernel = functools.partial(
        _sgk_kernel, H=H, W=W, KH=kh, KW=kw, PH=ph, PW=pw, TH=th,
        channel_wise=channel_wise)

    cp_kwargs = dict(dimension_semantics=("parallel", "parallel", "parallel"))
    if fp > _SAFE_VMEM_BYTES:
        # Cap the request by the physical per-core VMEM (v7x has only 64 MiB).
        try:
            cap = int(pltpu.get_tpu_info().vmem_capacity_bytes)
        except Exception:
            cap = 64 * 1024 * 1024
        cp_kwargs["vmem_limit_bytes"] = int(min(fp + (4 << 20), int(cap * 0.85)))

    out = pl.pallas_call(
        kernel,
        out_shape=jax.ShapeDtypeStruct((N, C, H, W), feature1.dtype),
        grid_spec=pltpu.PrefetchScalarGridSpec(
            num_scalar_prefetch=0,
            grid=(N, nc, n_ht),
            in_specs=[
                pl.BlockSpec((_SQZ, cb, th, W),
                             lambda b, ci, hi: (b, ci, hi, 0)),
                pl.BlockSpec((_SQZ, cb, _SQZ, th + 2 * ph, W + 2 * pw),
                             lambda b, ci, hi: (b, ci, hi, 0, 0)),
            ],
            out_specs=pl.BlockSpec((_SQZ, cb, th, W),
                                   lambda b, ci, hi: (b, ci, hi, 0)),
        ),
        compiler_params=pltpu.CompilerParams(**cp_kwargs),
    )(feature1, f2_win)

    return out


def _reference_numpy(f1, f2, k=3, pad=1, channel_wise=False):
    """Literal unfold -> gauss -> fold reference (matches the PyTorch module)."""
    f1 = np.asarray(f1, np.float64)
    f2 = np.asarray(f2, np.float64)
    bs, ch, h, w = f1.shape
    f1p = np.pad(f1, ((0, 0), (0, 0), (pad, pad), (pad, pad)))
    out = np.zeros((bs, ch, h, w), np.float64)
    for b in range(bs):
        for i in range(h):
            for j in range(w):
                patch1 = f1p[b, :, i:i + k, j:j + k]          # (ch, k, k)
                f2c = f2[b, :, i, j][:, None, None]           # center tap
                d = (patch1 - f2c) ** 2
                if not channel_wise:
                    d = d.sum(0, keepdims=True)
                sup = np.exp(-0.5 * d) * patch1
                for ky in range(k):
                    for kx in range(k):
                        y, x = i + ky - pad, j + kx - pad
                        if 0 <= y < h and 0 <= x < w:
                            out[b, :, y, x] += sup[:, ky, kx]
    return out


if __name__ == "__main__":
    key = jax.random.PRNGKey(0)
    k1, k2, k3, k4 = jax.random.split(key, 4)

    N, C, H, W = 2, 4, 16, 16
    feature1 = jax.random.normal(k1, (N, C, H, W), dtype=jnp.float32)
    feature2 = jax.random.normal(k2, (N, C, H, W), dtype=jnp.float32)
    g1 = jax.random.normal(k3, (1, 16, 16, 16), dtype=jnp.float32)
    g2 = jax.random.normal(k4, (1, 16, 16, 16), dtype=jnp.float32)

    cases = [
        # module defaults, both channel_wise modes
        dict(a=feature1, b=feature2, channel_wise=False),
        dict(a=feature1, b=feature2, channel_wise=True),
        # multiple H tiles (exercises halo window + hi-dependent masks, N=1)
        dict(a=feature1[:1], b=feature2[:1], channel_wise=False, tile_h=8),
        # channel-block split + H split (channel_wise=True only)
        dict(a=g1, b=g2, channel_wise=True, tile_h=8, tile_c=8),
    ]

    for cfg in cases:
        a, b = cfg.pop("a"), cfg.pop("b")
        out = supervised_gauss_kernel2d(a, b, kernel_size=3, stride=1,
                                        padding=1, dilation=1, **cfg)
        out = jax.block_until_ready(out)
        ref = _reference_numpy(a, b, k=3, pad=1,
                               channel_wise=cfg["channel_wise"])
        np.testing.assert_allclose(np.asarray(out), ref, rtol=1e-4, atol=1e-4)

    print("KERNEL_OK")
</pallas_src>

<mosaic_0001>
module attributes {stable_mosaic.version = 11 : i64} {
  func.func @_sgk_kernel(%arg0: i32, %arg1: i32, %arg2: i32, %arg3: memref<1x4x16x16xf32, #tpu.memory_space<vmem>>, %arg4: memref<1x4x1x18x18xf32, #tpu.memory_space<vmem>>, %arg5: memref<1x4x16x16xf32, #tpu.memory_space<vmem>>) attributes {dimension_semantics = [#tpu.dimension_semantics<parallel>, #tpu.dimension_semantics<parallel>, #tpu.dimension_semantics<parallel>], iteration_bounds = array<i64: 2, 1, 1>, scalar_prefetch = 0 : i64, scratch_operands = 0 : i64, tpu.core_type = #tpu.core_type<tc>, window_params = [{transform_indices = @transform_0, window_bounds = array<i64: 1, 4, 16, 16>}, {transform_indices = @transform_1, window_bounds = array<i64: 1, 4, 1, 18, 18>}, {transform_indices = @transform_2, window_bounds = array<i64: 1, 4, 16, 16>}]} {
    %c0 = arith.constant 0 : index
    %c0_0 = arith.constant 0 : index
    %c0_1 = arith.constant 0 : index
    %c0_2 = arith.constant 0 : index
    %0 = vector.load %arg3[%c0, %c0_0, %c0_1, %c0_2] : memref<1x4x16x16xf32, #tpu.memory_space<vmem>>, vector<1x4x16x16xf32>
    %1 = vector.shape_cast %0 : vector<1x4x16x16xf32> to vector<4x16x16xf32>
    %c0_3 = arith.constant 0 : index
    %c0_4 = arith.constant 0 : index
    %c0_5 = arith.constant 0 : index
    %c0_6 = arith.constant 0 : index
    %c0_7 = arith.constant 0 : index
    %2 = vector.load %arg4[%c0_3, %c0_4, %c0_5, %c0_6, %c0_7] : memref<1x4x1x18x18xf32, #tpu.memory_space<vmem>>, vector<1x4x1x18x18xf32>
    %3 = vector.shape_cast %2 : vector<1x4x1x18x18xf32> to vector<4x18x18xf32>
    %4 = tpu.iota {dimensions = array<i32: 0>} : vector<16x16xi32>
    %c16_i32 = arith.constant 16 : i32
    %5 = arith.muli %arg2, %c16_i32 : i32
    %6 = vector.broadcast %5 : i32 to vector<16x16xi32>
    %7 = arith.addi %4, %6 : vector<16x16xi32>
    %8 = tpu.iota {dimensions = array<i32: 1>} : vector<16x16xi32>
    %c-1_i32 = arith.constant -1 : i32
    %9 = vector.broadcast %c-1_i32 : i32 to vector<16x16xi32>
    %10 = arith.addi %7, %9 : vector<16x16xi32>
    %c0_i32 = arith.constant 0 : i32
    %11 = vector.broadcast %c0_i32 : i32 to vector<16x16xi32>
    %12 = arith.cmpi sge, %10, %11 : vector<16x16xi32>
    %c-1_i32_8 = arith.constant -1 : i32
    %13 = vector.broadcast %c-1_i32_8 : i32 to vector<16x16xi32>
    %14 = arith.addi %7, %13 : vector<16x16xi32>
    %c16_i32_9 = arith.constant 16 : i32
    %15 = vector.broadcast %c16_i32_9 : i32 to vector<16x16xi32>
    %16 = arith.cmpi slt, %14, %15 : vector<16x16xi32>
    %17 = arith.andi %12, %16 : vector<16x16xi1>
    %c0_i32_10 = arith.constant 0 : i32
    %18 = vector.broadcast %c0_i32_10 : i32 to vector<16x16xi32>
    %19 = arith.addi %7, %18 : vector<16x16xi32>
    %c0_i32_11 = arith.constant 0 : i32
    %20 = vector.broadcast %c0_i32_11 : i32 to vector<16x16xi32>
    %21 = arith.cmpi sge, %19, %20 : vector<16x16xi32>
    %c0_i32_12 = arith.constant 0 : i32
    %22 = vector.broadcast %c0_i32_12 : i32 to vector<16x16xi32>
    %23 = arith.addi %7, %22 : vector<16x16xi32>
    %c16_i32_13 = arith.constant 16 : i32
    %24 = vector.broadcast %c16_i32_13 : i32 to vector<16x16xi32>
    %25 = arith.cmpi slt, %23, %24 : vector<16x16xi32>
    %26 = arith.andi %21, %25 : vector<16x16xi1>
    %c1_i32 = arith.constant 1 : i32
    %27 = vector.broadcast %c1_i32 : i32 to vector<16x16xi32>
    %28 = arith.addi %7, %27 : vector<16x16xi32>
    %c0_i32_14 = arith.constant 0 : i32
    %29 = vector.broadcast %c0_i32_14 : i32 to vector<16x16xi32>
    %30 = arith.cmpi sge, %28, %29 : vector<16x16xi32>
    %c1_i32_15 = arith.constant 1 : i32
    %31 = vector.broadcast %c1_i32_15 : i32 to vector<16x16xi32>
    %32 = arith.addi %7, %31 : vector<16x16xi32>
    %c16_i32_16 = arith.constant 16 : i32
    %33 = vector.broadcast %c16_i32_16 : i32 to vector<16x16xi32>
    %34 = arith.cmpi slt, %32, %33 : vector<16x16xi32>
    %35 = arith.andi %30, %34 : vector<16x16xi1>
    %c-1_i32_17 = arith.constant -1 : i32
    %36 = vector.broadcast %c-1_i32_17 : i32 to vector<16x16xi32>
    %37 = arith.addi %8, %36 : vector<16x16xi32>
    %c0_i32_18 = arith.constant 0 : i32
    %38 = vector.broadcast %c0_i32_18 : i32 to vector<16x16xi32>
    %39 = arith.cmpi sge, %37, %38 : vector<16x16xi32>
    %c-1_i32_19 = arith.constant -1 : i32
    %40 = vector.broadcast %c-1_i32_19 : i32 to vector<16x16xi32>
    %41 = arith.addi %8, %40 : vector<16x16xi32>
    %c16_i32_20 = arith.constant 16 : i32
    %42 = vector.broadcast %c16_i32_20 : i32 to vector<16x16xi32>
    %43 = arith.cmpi slt, %41, %42 : vector<16x16xi32>
    %44 = arith.andi %39, %43 : vector<16x16xi1>
    %c0_i32_21 = arith.constant 0 : i32
    %45 = vector.broadcast %c0_i32_21 : i32 to vector<16x16xi32>
    %46 = arith.addi %8, %45 : vector<16x16xi32>
    %c0_i32_22 = arith.constant 0 : i32
    %47 = vector.broadcast %c0_i32_22 : i32 to vector<16x16xi32>
    %48 = arith.cmpi sge, %46, %47 : vector<16x16xi32>
    %c0_i32_23 = arith.constant 0 : i32
    %49 = vector.broadcast %c0_i32_23 : i32 to vector<16x16xi32>
    %50 = arith.addi %8, %49 : vector<16x16xi32>
    %c16_i32_24 = arith.constant 16 : i32
    %51 = vector.broadcast %c16_i32_24 : i32 to vector<16x16xi32>
    %52 = arith.cmpi slt, %50, %51 : vector<16x16xi32>
    %53 = arith.andi %48, %52 : vector<16x16xi1>
    %c1_i32_25 = arith.constant 1 : i32
    %54 = vector.broadcast %c1_i32_25 : i32 to vector<16x16xi32>
    %55 = arith.addi %8, %54 : vector<16x16xi32>
    %c0_i32_26 = arith.constant 0 : i32
    %56 = vector.broadcast %c0_i32_26 : i32 to vector<16x16xi32>
    %57 = arith.cmpi sge, %55, %56 : vector<16x16xi32>
    %c1_i32_27 = arith.constant 1 : i32
    %58 = vector.broadcast %c1_i32_27 : i32 to vector<16x16xi32>
    %59 = arith.addi %8, %58 : vector<16x16xi32>
    %c16_i32_28 = arith.constant 16 : i32
    %60 = vector.broadcast %c16_i32_28 : i32 to vector<16x16xi32>
    %61 = arith.cmpi slt, %59, %60 : vector<16x16xi32>
    %62 = arith.andi %57, %61 : vector<16x16xi1>
    %63 = arith.mulf %1, %1 : vector<4x16x16xf32>
    %cst = arith.constant dense<0.000000e+00> : vector<16x16xf32>
    %64 = vector.multi_reduction <add>, %63, %cst [0] : vector<4x16x16xf32> to vector<16x16xf32>
    %65 = arith.mulf %3, %3 : vector<4x18x18xf32>
    %cst_29 = arith.constant dense<0.000000e+00> : vector<18x18xf32>
    %66 = vector.multi_reduction <add>, %65, %cst_29 [0] : vector<4x18x18xf32> to vector<18x18xf32>
    %67 = vector.extract_strided_slice %3 {offsets = [0, 2, 2], sizes = [4, 16, 16], strides = [1, 1, 1]} : vector<4x18x18xf32> to vector<4x16x16xf32>
    %68 = arith.mulf %1, %67 : vector<4x16x16xf32>
    %cst_30 = arith.constant dense<0.000000e+00> : vector<16x16xf32>
    %69 = vector.multi_reduction <add>, %68, %cst_30 [0] : vector<4x16x16xf32> to vector<16x16xf32>
    %70 = vector.extract_strided_slice %66 {offsets = [2, 2], sizes = [16, 16], strides = [1, 1]} : vector<18x18xf32> to vector<16x16xf32>
    %71 = arith.addf %64, %70 : vector<16x16xf32>
    %cst_31 = arith.constant 2.000000e+00 : f32
    %72 = vector.broadcast %cst_31 : f32 to vector<16x16xf32>
    %73 = arith.mulf %72, %69 : vector<16x16xf32>
    %74 = arith.subf %71, %73 : vector<16x16xf32>
    %cst_32 = arith.constant -5.000000e-01 : f32
    %75 = vector.broadcast %cst_32 : f32 to vector<16x16xf32>
    %76 = arith.mulf %75, %74 : vector<16x16xf32>
    %77 = math.exp %76 : vector<16x16xf32>
    %78 = arith.andi %35, %62 : vector<16x16xi1>
    %cst_33 = arith.constant 0.000000e+00 : f32
    %79 = vector.broadcast %cst_33 : f32 to vector<16x16xf32>
    %80 = arith.select %78, %77, %79 : vector<16x16xi1>, vector<16x16xf32>
    %81 = vector.extract_strided_slice %3 {offsets = [0, 2, 1], sizes = [4, 16, 16], strides = [1, 1, 1]} : vector<4x18x18xf32> to vector<4x16x16xf32>
    %82 = arith.mulf %1, %81 : vector<4x16x16xf32>
    %cst_34 = arith.constant dense<0.000000e+00> : vector<16x16xf32>
    %83 = vector.multi_reduction <add>, %82, %cst_34 [0] : vector<4x16x16xf32> to vector<16x16xf32>
    %84 = vector.extract_strided_slice %66 {offsets = [2, 1], sizes = [16, 16], strides = [1, 1]} : vector<18x18xf32> to vector<16x16xf32>
    %85 = arith.addf %64, %84 : vector<16x16xf32>
    %cst_35 = arith.constant 2.000000e+00 : f32
    %86 = vector.broadcast %cst_35 : f32 to vector<16x16xf32>
    %87 = arith.mulf %86, %83 : vector<16x16xf32>
    %88 = arith.subf %85, %87 : vector<16x16xf32>
    %cst_36 = arith.constant -5.000000e-01 : f32
    %89 = vector.broadcast %cst_36 : f32 to vector<16x16xf32>
    %90 = arith.mulf %89, %88 : vector<16x16xf32>
    %91 = math.exp %90 : vector<16x16xf32>
    %92 = arith.andi %35, %53 : vector<16x16xi1>
    %cst_37 = arith.constant 0.000000e+00 : f32
    %93 = vector.broadcast %cst_37 : f32 to vector<16x16xf32>
    %94 = arith.select %92, %91, %93 : vector<16x16xi1>, vector<16x16xf32>
    %95 = arith.addf %80, %94 : vector<16x16xf32>
    %96 = vector.extract_strided_slice %3 {offsets = [0, 2, 0], sizes = [4, 16, 16], strides = [1, 1, 1]} : vector<4x18x18xf32> to vector<4x16x16xf32>
    %97 = arith.mulf %1, %96 : vector<4x16x16xf32>
    %cst_38 = arith.constant dense<0.000000e+00> : vector<16x16xf32>
    %98 = vector.multi_reduction <add>, %97, %cst_38 [0] : vector<4x16x16xf32> to vector<16x16xf32>
    %99 = vector.extract_strided_slice %66 {offsets = [2, 0], sizes = [16, 16], strides = [1, 1]} : vector<18x18xf32> to vector<16x16xf32>
    %100 = arith.addf %64, %99 : vector<16x16xf32>
    %cst_39 = arith.constant 2.000000e+00 : f32
    %101 = vector.broadcast %cst_39 : f32 to vector<16x16xf32>
    %102 = arith.mulf %101, %98 : vector<16x16xf32>
    %103 = arith.subf %100, %102 : vector<16x16xf32>
    %cst_40 = arith.constant -5.000000e-01 : f32
    %104 = vector.broadcast %cst_40 : f32 to vector<16x16xf32>
    %105 = arith.mulf %104, %103 : vector<16x16xf32>
    %106 = math.exp %105 : vector<16x16xf32>
    %107 = arith.andi %35, %44 : vector<16x16xi1>
    %cst_41 = arith.constant 0.000000e+00 : f32
    %108 = vector.broadcast %cst_41 : f32 to vector<16x16xf32>
    %109 = arith.select %107, %106, %108 : vector<16x16xi1>, vector<16x16xf32>
    %110 = arith.addf %95, %109 : vector<16x16xf32>
    %111 = vector.extract_strided_slice %3 {offsets = [0, 1, 2], sizes = [4, 16, 16], strides = [1, 1, 1]} : vector<4x18x18xf32> to vector<4x16x16xf32>
    %112 = arith.mulf %1, %111 : vector<4x16x16xf32>
    %cst_42 = arith.constant dense<0.000000e+00> : vector<16x16xf32>
    %113 = vector.multi_reduction <add>, %112, %cst_42 [0] : vector<4x16x16xf32> to vector<16x16xf32>
    %114 = vector.extract_strided_slice %66 {offsets = [1, 2], sizes = [16, 16], strides = [1, 1]} : vector<18x18xf32> to vector<16x16xf32>
    %115 = arith.addf %64, %114 : vector<16x16xf32>
    %cst_43 = arith.constant 2.000000e+00 : f32
    %116 = vector.broadcast %cst_43 : f32 to vector<16x16xf32>
    %117 = arith.mulf %116, %113 : vector<16x16xf32>
    %118 = arith.subf %115, %117 : vector<16x16xf32>
    %cst_44 = arith.constant -5.000000e-01 : f32
    %119 = vector.broadcast %cst_44 : f32 to vector<16x16xf32>
    %120 = arith.mulf %119, %118 : vector<16x16xf32>
    %121 = math.exp %120 : vector<16x16xf32>
    %122 = arith.andi %26, %62 : vector<16x16xi1>
    %cst_45 = arith.constant 0.000000e+00 : f32
    %123 = vector.broadcast %cst_45 : f32 to vector<16x16xf32>
    %124 = arith.select %122, %121, %123 : vector<16x16xi1>, vector<16x16xf32>
    %125 = arith.addf %110, %124 : vector<16x16xf32>
    %126 = vector.extract_strided_slice %3 {offsets = [0, 1, 1], sizes = [4, 16, 16], strides = [1, 1, 1]} : vector<4x18x18xf32> to vector<4x16x16xf32>
    %127 = arith.mulf %1, %126 : vector<4x16x16xf32>
    %cst_46 = arith.constant dense<0.000000e+00> : vector<16x16xf32>
    %128 = vector.multi_reduction <add>, %127, %cst_46 [0] : vector<4x16x16xf32> to vector<16x16xf32>
    %129 = vector.extract_strided_slice %66 {offsets = [1, 1], sizes = [16, 16], strides = [1, 1]} : vector<18x18xf32> to vector<16x16xf32>
    %130 = arith.addf %64, %129 : vector<16x16xf32>
    %cst_47 = arith.constant 2.000000e+00 : f32
    %131 = vector.broadcast %cst_47 : f32 to vector<16x16xf32>
    %132 = arith.mulf %131, %128 : vector<16x16xf32>
    %133 = arith.subf %130, %132 : vector<16x16xf32>
    %cst_48 = arith.constant -5.000000e-01 : f32
    %134 = vector.broadcast %cst_48 : f32 to vector<16x16xf32>
    %135 = arith.mulf %134, %133 : vector<16x16xf32>
    %136 = math.exp %135 : vector<16x16xf32>
    %137 = arith.addf %125, %136 : vector<16x16xf32>
    %138 = vector.extract_strided_slice %3 {offsets = [0, 1, 0], sizes = [4, 16, 16], strides = [1, 1, 1]} : vector<4x18x18xf32> to vector<4x16x16xf32>
    %139 = arith.mulf %1, %138 : vector<4x16x16xf32>
    %cst_49 = arith.constant dense<0.000000e+00> : vector<16x16xf32>
    %140 = vector.multi_reduction <add>, %139, %cst_49 [0] : vector<4x16x16xf32> to vector<16x16xf32>
    %141 = vector.extract_strided_slice %66 {offsets = [1, 0], sizes = [16, 16], strides = [1, 1]} : vector<18x18xf32> to vector<16x16xf32>
    %142 = arith.addf %64, %141 : vector<16x16xf32>
    %cst_50 = arith.constant 2.000000e+00 : f32
    %143 = vector.broadcast %cst_50 : f32 to vector<16x16xf32>
    %144 = arith.mulf %143, %140 : vector<16x16xf32>
    %145 = arith.subf %142, %144 : vector<16x16xf32>
    %cst_51 = arith.constant -5.000000e-01 : f32
    %146 = vector.broadcast %cst_51 : f32 to vector<16x16xf32>
    %147 = arith.mulf %146, %145 : vector<16x16xf32>
    %148 = math.exp %147 : vector<16x16xf32>
    %149 = arith.andi %26, %44 : vector<16x16xi1>
    %cst_52 = arith.constant 0.000000e+00 : f32
    %150 = vector.broadcast %cst_52 : f32 to vector<16x16xf32>
    %151 = arith.select %149, %148, %150 : vector<16x16xi1>, vector<16x16xf32>
    %152 = arith.addf %137, %151 : vector<16x16xf32>
    %153 = vector.extract_strided_slice %3 {offsets = [0, 0, 2], sizes = [4, 16, 16], strides = [1, 1, 1]} : vector<4x18x18xf32> to vector<4x16x16xf32>
    %154 = arith.mulf %1, %153 : vector<4x16x16xf32>
    %cst_53 = arith.constant dense<0.000000e+00> : vector<16x16xf32>
    %155 = vector.multi_reduction <add>, %154, %cst_53 [0] : vector<4x16x16xf32> to vector<16x16xf32>
    %156 = vector.extract_strided_slice %66 {offsets = [0, 2], sizes = [16, 16], strides = [1, 1]} : vector<18x18xf32> to vector<16x16xf32>
    %157 = arith.addf %64, %156 : vector<16x16xf32>
    %cst_54 = arith.constant 2.000000e+00 : f32
    %158 = vector.broadcast %cst_54 : f32 to vector<16x16xf32>
    %159 = arith.mulf %158, %155 : vector<16x16xf32>
    %160 = arith.subf %157, %159 : vector<16x16xf32>
    %cst_55 = arith.constant -5.000000e-01 : f32
    %161 = vector.broadcast %cst_55 : f32 to vector<16x16xf32>
    %162 = arith.mulf %161, %160 : vector<16x16xf32>
    %163 = math.exp %162 : vector<16x16xf32>
    %164 = arith.andi %17, %62 : vector<16x16xi1>
    %cst_56 = arith.constant 0.000000e+00 : f32
    %165 = vector.broadcast %cst_56 : f32 to vector<16x16xf32>
    %166 = arith.select %164, %163, %165 : vector<16x16xi1>, vector<16x16xf32>
    %167 = arith.addf %152, %166 : vector<16x16xf32>
    %168 = vector.extract_strided_slice %3 {offsets = [0, 0, 1], sizes = [4, 16, 16], strides = [1, 1, 1]} : vector<4x18x18xf32> to vector<4x16x16xf32>
    %169 = arith.mulf %1, %168 : vector<4x16x16xf32>
    %cst_57 = arith.constant dense<0.000000e+00> : vector<16x16xf32>
    %170 = vector.multi_reduction <add>, %169, %cst_57 [0] : vector<4x16x16xf32> to vector<16x16xf32>
    %171 = vector.extract_strided_slice %66 {offsets = [0, 1], sizes = [16, 16], strides = [1, 1]} : vector<18x18xf32> to vector<16x16xf32>
    %172 = arith.addf %64, %171 : vector<16x16xf32>
    %cst_58 = arith.constant 2.000000e+00 : f32
    %173 = vector.broadcast %cst_58 : f32 to vector<16x16xf32>
    %174 = arith.mulf %173, %170 : vector<16x16xf32>
    %175 = arith.subf %172, %174 : vector<16x16xf32>
    %cst_59 = arith.constant -5.000000e-01 : f32
    %176 = vector.broadcast %cst_59 : f32 to vector<16x16xf32>
    %177 = arith.mulf %176, %175 : vector<16x16xf32>
    %178 = math.exp %177 : vector<16x16xf32>
    %179 = arith.andi %17, %53 : vector<16x16xi1>
    %cst_60 = arith.constant 0.000000e+00 : f32
    %180 = vector.broadcast %cst_60 : f32 to vector<16x16xf32>
    %181 = arith.select %179, %178, %180 : vector<16x16xi1>, vector<16x16xf32>
    %182 = arith.addf %167, %181 : vector<16x16xf32>
    %183 = vector.extract_strided_slice %3 {offsets = [0, 0, 0], sizes = [4, 16, 16], strides = [1, 1, 1]} : vector<4x18x18xf32> to vector<4x16x16xf32>
    %184 = arith.mulf %1, %183 : vector<4x16x16xf32>
    %cst_61 = arith.constant dense<0.000000e+00> : vector<16x16xf32>
    %185 = vector.multi_reduction <add>, %184, %cst_61 [0] : vector<4x16x16xf32> to vector<16x16xf32>
    %186 = vector.extract_strided_slice %66 {offsets = [0, 0], sizes = [16, 16], strides = [1, 1]} : vector<18x18xf32> to vector<16x16xf32>
    %187 = arith.addf %64, %186 : vector<16x16xf32>
    %cst_62 = arith.constant 2.000000e+00 : f32
    %188 = vector.broadcast %cst_62 : f32 to vector<16x16xf32>
    %189 = arith.mulf %188, %185 : vector<16x16xf32>
    %190 = arith.subf %187, %189 : vector<16x16xf32>
    %cst_63 = arith.constant -5.000000e-01 : f32
    %191 = vector.broadcast %cst_63 : f32 to vector<16x16xf32>
    %192 = arith.mulf %191, %190 : vector<16x16xf32>
    %193 = math.exp %192 : vector<16x16xf32>
    %194 = arith.andi %17, %44 : vector<16x16xi1>
    %cst_64 = arith.constant 0.000000e+00 : f32
    %195 = vector.broadcast %cst_64 : f32 to vector<16x16xf32>
    %196 = arith.select %194, %193, %195 : vector<16x16xi1>, vector<16x16xf32>
    %197 = arith.addf %182, %196 : vector<16x16xf32>
    %198 = vector.shape_cast %197 : vector<16x16xf32> to vector<1x16x16xf32>
    %199 = vector.broadcast %198 : vector<1x16x16xf32> to vector<4x16x16xf32>
    %200 = arith.mulf %1, %199 : vector<4x16x16xf32>
    %c0_65 = arith.constant 0 : index
    %c0_66 = arith.constant 0 : index
    %c0_67 = arith.constant 0 : index
    %c0_68 = arith.constant 0 : index
    %201 = vector.load %arg5[%c0_65, %c0_66, %c0_67, %c0_68] : memref<1x4x16x16xf32, #tpu.memory_space<vmem>>, vector<1x4x16x16xf32>
    %202 = vector.shape_cast %201 : vector<1x4x16x16xf32> to vector<4x16x16xf32>
    %203 = vector.shape_cast %200 : vector<4x16x16xf32> to vector<1x4x16x16xf32>
    tpu.vector_store %arg5[%c0_65, %c0_66, %c0_67, %c0_68], %203 {strides = array<i32>} : memref<1x4x16x16xf32, #tpu.memory_space<vmem>>, vector<1x4x16x16xf32>,
    return
  }
  func.func @transform_0(%arg0: i32, %arg1: i32, %arg2: i32) -> (i32, i32, i32, i32) {
    %c0_i32 = arith.constant 0 : i32
    %c0_i32_0 = arith.constant 0 : i32
    return %arg0, %arg1, %arg2, %c0_i32 : i32, i32, i32, i32
  }
  func.func @transform_1(%arg0: i32, %arg1: i32, %arg2: i32) -> (i32, i32, i32, i32, i32) {
    %c0_i32 = arith.constant 0 : i32
    %c0_i32_0 = arith.constant 0 : i32
    %c0_i32_1 = arith.constant 0 : i32
    return %arg0, %arg1, %arg2, %c0_i32, %c0_i32_0 : i32, i32, i32, i32, i32
  }
  func.func @transform_2(%arg0: i32, %arg1: i32, %arg2: i32) -> (i32, i32, i32, i32) {
    %c0_i32 = arith.constant 0 : i32
    %c0_i32_0 = arith.constant 0 : i32
    return %arg0, %arg1, %arg2, %c0_i32 : i32, i32, i32, i32
  }
}

</mosaic_0001>

<llo_original>
// kernel: tpu_custom_call.1
$region0: #{tpu_custom_call.1}
  #allocation0 [shape = 'u32[]', space=smem, size = 0x4, offset = 0x4, fixed_abs, tag = 'smem constant byte address 0x4 - core index']
  #allocation1 [shape = 'u32[144,128]{1,0:T(1,128)}', space=vmem, size = 0x12000, scoped, tag = 'internal scratch']
  %s0 = inlined_call_operand.vmem [shape: f32[2,4,16,16], index: 0, kind: input, shape index: {}]
  %s1 = inlined_call_operand.vmem [shape: f32[2,4,1,18,18], index: 1, kind: input, shape index: {}]
  %s2 = inlined_call_operand.hbm [shape: f32[2,4,16,16], index: 2, kind: output, shape index: {}]
  %s3 = sld [smem:[#allocation0]]
  $region41: #{tpu_custom_call.1} parent=0
    _
  %s5 = ssub.s32 1, %s3
  %s6 = scalar_select 0, %s5, %s3
  $region1: #{tpu_custom_call.1} parent=0
    #allocation2 [shape = 'u8[65536]{0}', space=vmem, size = 0x10000, scoped, tag = 'output window, operand 0']
    #allocation3 [shape = 's32[2]{0}', space=sflag, size = 0x8, scoped, tag = 'scoped memory for tpu_custom_call.1']
    %7 = vsyncpa [#allocation3], 0
    %s8 = scalar_lea.sflag [#allocation3], 1
    %9 = vsyncpa %s8, 0
    loop: start=0, step=1, limit=4
    $region2: #{tpu_custom_call.1} parent=1 // loop_pre_header
      _
    $region3: #{tpu_custom_call.1} parent=1 // loop_header
      %s11 = sphi 0, %s15
      %p12 = scmp.ge.s32.totalorder %s11, 4
      %s18 = sphi 0, %s37
      %s19 = sphi 0, %s33
      %s20 = sphi 0, %s29
      %s21 = sphi 0, %s18
      %s22 = sphi 0, %s19
      %s23 = sphi 0, %s20
      %s24 = sphi 0, %s21
      %s25 = sphi 0, %s22
      %s26 = sphi 0, %s23
      %s44 = sphi 0, %s46
      %s47 = sphi 0, %s44
      %s48 = sphi 0, %s47
      %s64 = sphi 0, %s48
      %s74 = sphi 0, %s76
      %s77 = sphi 0, %s74
      %s78 = sphi 0, %s77
      %s94 = sphi 0, %s78
      %s104 = sphi 0, %s106
      %s107 = sphi 0, %s104
      %s108 = sphi 0, %s107
      %s124 = sphi 0, %s108
    $region4: #{tpu_custom_call.1} parent=1 // loop_header_branch
      %14 = sbr.rel (%p12) target = $region8
    $region5: #{tpu_custom_call.1} parent=1 // loop_body
      %s16 = ssub.s32 %s11, 1
      %s17 = ssub.s32 %s11, 2
      %s27 = sadd.s32 1, %s20
      %p28 = scmp.ge.s32.totalorder %s27, 1
      %s29 = scalar_select %p28, 0, %s27
      %s30 = sadd.s32 1, %s19
      %s31 = scalar_select %p28, %s30, %s19
      %p32 = scmp.ge.s32.totalorder %s31, 1
      %s33 = scalar_select %p32, 0, %s31
      %s34 = sadd.s32 1, %s18
      %s35 = scalar_select %p32, %s34, %s18
      %p36 = scmp.ge.s32.totalorder %s35, 2
      %s37 = scalar_select %p36, 0, %s35
      %s38 = ssub.s32 %s18, %s37
      %s39 = ssub.s32 %s19, %s33
      %s40 = sor.u32 %s38, %s39
      %s41 = ssub.s32 %s20, %s29
      %s42 = sor.u32 %s40, %s41
      %p43 = scmp.eq.s32.totalorder %s42, 0
      %s45 = sadd.s32 %s44, 1
      %s46 = scalar_select %p43, %s44, %s45
      %p49 = pneg %p43
      %p50 = scmp.eq.s32.totalorder %s11, 1
      %p51 = por %p49, %p50
      %p52 = scmp.ne.s32.totalorder %s44, %s47
      %p53 = scmp.eq.s32.totalorder %s11, 0
      %p54 = por %p52, %p53
      %p55 = scmp.ne.s32.totalorder %s44, %s47
      %p56 = scmp.eq.s32.totalorder %s16, 1
      %p57 = por %p55, %p56
      %p58 = scmp.ne.s32.totalorder %s47, %s48
      %p59 = scmp.eq.s32.totalorder %s16, 0
      %p60 = por %p58, %p59
      %p61 = scmp.ne.s32.totalorder %s47, %s48
      %p62 = scmp.eq.s32.totalorder %s17, 1
      %p63 = por %p61, %p62
      %p65 = scmp.ne.s32.totalorder %s48, %s64
      %p66 = scmp.eq.s32.totalorder %s17, 0
      %p67 = por %p65, %p66
      %s68 = ssub.s32 %s18, %s37
      %s69 = ssub.s32 %s19, %s33
      %s70 = sor.u32 %s68, %s69
      %s71 = ssub.s32 %s20, %s29
      %s72 = sor.u32 %s70, %s71
      %p73 = scmp.eq.s32.totalorder %s72, 0
      %s75 = sadd.s32 %s74, 1
      %s76 = scalar_select %p73, %s74, %s75
      %p79 = pneg %p73
      %p80 = scmp.eq.s32.totalorder %s11, 1
      %p81 = por %p79, %p80
      %p82 = scmp.ne.s32.totalorder %s74, %s77
      %p83 = scmp.eq.s32.totalorder %s11, 0
      %p84 = por %p82, %p83
      %p85 = scmp.ne.s32.totalorder %s74, %s77
      %p86 = scmp.eq.s32.totalorder %s16, 1
      %p87 = por %p85, %p86
      %p88 = scmp.ne.s32.totalorder %s77, %s78
      %p89 = scmp.eq.s32.totalorder %s16, 0
      %p90 = por %p88, %p89
      %p91 = scmp.ne.s32.totalorder %s77, %s78
      %p92 = scmp.eq.s32.totalorder %s17, 1
      %p93 = por %p91, %p92
      %p95 = scmp.ne.s32.totalorder %s78, %s94
      %p96 = scmp.eq.s32.totalorder %s17, 0
      %p97 = por %p95, %p96
      %s98 = ssub.s32 %s18, %s37
      %s99 = ssub.s32 %s19, %s33
      %s100 = sor.u32 %s98, %s99
      %s101 = ssub.s32 %s20, %s29
      %s102 = sor.u32 %s100, %s101
      %p103 = scmp.eq.s32.totalorder %s102, 0
      %s105 = sadd.s32 %s104, 1
      %s106 = scalar_select %p103, %s104, %s105
      %p109 = pneg %p103
      %p110 = scmp.eq.s32.totalorder %s11, 1
      %p111 = por %p109, %p110
      %p112 = scmp.ne.s32.totalorder %s104, %s107
      %p113 = scmp.eq.s32.totalorder %s11, 0
      %p114 = por %p112, %p113
      %p115 = scmp.ne.s32.totalorder %s104, %s107
      %p116 = scmp.eq.s32.totalorder %s16, 1
      %p117 = por %p115, %p116
      %p118 = scmp.ne.s32.totalorder %s107, %s108
      %p119 = scmp.eq.s32.totalorder %s16, 0
      %p120 = por %p118, %p119
      %p121 = scmp.ne.s32.totalorder %s107, %s108
      %p122 = scmp.eq.s32.totalorder %s17, 1
      %p123 = por %p121, %p122
      %p125 = scmp.ne.s32.totalorder %s108, %s124
      %p126 = scmp.eq.s32.totalorder %s17, 0
      %p127 = por %p125, %p126
      %p128 = scmp.le.s32.totalorder 1, %s11
      %p129 = scmp.lt.s32.totalorder %s11, 3
      %p130 = pnand %p128, %p129
      %p131 = pneg %p130
      // Predicated region
      $region9: #{tpu_custom_call.1} parent=5 // pred_check
        _
      $region10: #{tpu_custom_call.1} parent=5 // pred_check_branch
        %133 = sbr.rel (%p130) target = $region12
      $region11: #{tpu_custom_call.1} parent=5 // pred_region
        %s134 = ssub.s32 %s11, 1
      $region12: #{tpu_custom_call.1} parent=5 // pred_fallthru
        _
      %p135 = scmp.lt.s32.totalorder %s11, 2
      // Predicated region
      $region13: #{tpu_custom_call.1} parent=5 // pred_check
        %p136 = pneg %p135
      $region14: #{tpu_custom_call.1} parent=5 // pred_check_branch
        %138 = sbr.rel (%p136) target = $region16
      $region15: #{tpu_custom_call.1} parent=5 // pred_region
        // Predicated region
        $region17: #{tpu_custom_call.1} parent=15 // pred_check
          %p139 = pneg %p54
        $region18: #{tpu_custom_call.1} parent=15 // pred_check_branch
          %141 = sbr.rel (%p139) target = $region20
        $region19: #{tpu_custom_call.1} parent=15 // pred_region
          %s142 = smul.u32 4, %s19
          %s143 = smul.u32 2, %s20
          %p144 = scmp.lt.s32.totalorder %s18, 1
          %s145 = scalar_select %p144, %s18, 1
          %p146 = scmp.lt.s32.totalorder %s142, 3
          %s147 = scalar_select %p146, %s142, 3
          %p148 = scmp.lt.s32.totalorder %s143, 1
          %s149 = scalar_select %p148, %s143, 1
          %s150 = smul.addr %s147, 2
          %s151 = sadd.s32 %s149, %s150
          %s152 = smul.addr %s145, 8
          %s153 = sadd.s32 %s151, %s152
          %s154 = smul.addr %s153, 8
          %s155 = scalar_lea.vmem %s0, %s154
          %s156 = smul.u32 4, %s19
          %s157 = smul.u32 2, %s20
        $region20: #{tpu_custom_call.1} parent=15 // pred_fallthru
          _
        // Predicated region
        $region21: #{tpu_custom_call.1} parent=15 // pred_check
          %p158 = pneg %p84
        $region22: #{tpu_custom_call.1} parent=15 // pred_check_branch
          %160 = sbr.rel (%p158) target = $region24
        $region23: #{tpu_custom_call.1} parent=15 // pred_region
          %s161 = smul.u32 4, %s19
          %p162 = scmp.lt.s32.totalorder %s18, 1
          %s163 = scalar_select %p162, %s18, 1
          %p164 = scmp.lt.s32.totalorder %s161, 3
          %s165 = scalar_select %p164, %s161, 3
          %p166 = scmp.lt.s32.totalorder %s20, 0
          %s167 = scalar_select %p166, %s20, 0
          %s168 = smul.addr %s167, 3
          %s169 = smul.addr %s165, 3
          %s170 = sadd.s32 %s168, %s169
          %s171 = smul.addr %s163, 12
          %s172 = sadd.s32 %s170, %s171
          %s173 = smul.addr %s172, 8
          %s174 = scalar_lea.vmem %s1, %s173
          %s175 = smul.u32 4, %s19
        $region24: #{tpu_custom_call.1} parent=15 // pred_fallthru
          _
      $region16: #{tpu_custom_call.1} parent=5 // pred_fallthru
        _
      %p176 = scmp.le.s32.totalorder 1, %s11
      %p177 = scmp.lt.s32.totalorder %s11, 3
      %p178 = pnand %p176, %p177
      %p179 = pneg %p178
      // Predicated region
      $region25: #{tpu_custom_call.1} parent=5 // pred_check
        _
      $region26: #{tpu_custom_call.1} parent=5 // pred_check_branch
        %181 = sbr.rel (%p178) target = $region28
      $region27: #{tpu_custom_call.1} parent=5 // pred_region
        %s182 = ssub.s32 %s11, 1
        %s183 = smul.u32 4, %s22
        %s184 = smul.u32 2, %s23
        %p185 = scmp.lt.s32.totalorder %s21, 1
        %s186 = scalar_select %p185, %s21, 1
        %p187 = scmp.lt.s32.totalorder %s183, 3
        %s188 = scalar_select %p187, %s183, 3
        %p189 = scmp.lt.s32.totalorder %s184, 1
        %s190 = scalar_select %p189, %s184, 1
        %s191 = smul.addr %s188, 2
        %s192 = sadd.s32 %s190, %s191
        %s193 = smul.addr %s186, 8
        %s194 = sadd.s32 %s192, %s193
        %s195 = smul.addr %s194, 8
        %s196 = scalar_lea.vmem %s0, %s195
        %p197 = pneg %p60
        %p198 = pneg %p57
        %s199 = smul.u32 4, %s22
        %p200 = scmp.lt.s32.totalorder %s21, 1
        %s201 = scalar_select %p200, %s21, 1
        %p202 = scmp.lt.s32.totalorder %s199, 3
        %s203 = scalar_select %p202, %s199, 3
        %p204 = scmp.lt.s32.totalorder %s23, 0
        %s205 = scalar_select %p204, %s23, 0
        %s206 = smul.addr %s205, 3
        %s207 = smul.addr %s203, 3
        %s208 = sadd.s32 %s206, %s207
        %s209 = smul.addr %s201, 12
        %s210 = sadd.s32 %s208, %s209
        %s211 = smul.addr %s210, 8
        %s212 = scalar_lea.vmem %s1, %s211
        %p213 = pneg %p90
        %p214 = pneg %p87
        %p215 = pneg %p120
        %p216 = pneg %p117
        %s217 = sand.u32 %s107, 1
        %s218 = scalar_lea.sflag [#allocation3], %s217
        %s219 = sand.u32 %s107, 1
        %s220 = smul.addr %s219, 64
        %s221 = scalar_lea.vmem [#allocation2], %s220
        %s222 = smul.u32 4, %s22
        %s223 = smul.u32 2, %s23
        %p224 = scmp.lt.s32.totalorder %s21, 1
        %s225 = scalar_select %p224, %s21, 1
        %p226 = scmp.lt.s32.totalorder %s222, 3
        %s227 = scalar_select %p226, %s222, 3
        %p228 = scmp.lt.s32.totalorder %s223, 1
        %s229 = scalar_select %p228, %s223, 1
        %s230 = smul.addr %s227, 2
        %s231 = sadd.s32 %s229, %s230
        %s232 = smul.addr %s225, 8
        %s233 = sadd.s32 %s231, %s232
        %s234 = smul.addr %s233, 8
        %s235 = scalar_lea.vmem %s0, %s234
        %s236 = smul.u32 4, %s22
        %s237 = smul.u32 2, %s23
        %s238 = smul.u32 4, %s22
        %p239 = scmp.lt.s32.totalorder %s21, 1
        %s240 = scalar_select %p239, %s21, 1
        %p241 = scmp.lt.s32.totalorder %s238, 3
        %s242 = scalar_select %p241, %s238, 3
        %p243 = scmp.lt.s32.totalorder %s23, 0
        %s244 = scalar_select %p243, %s23, 0
        %s245 = smul.addr %s244, 3
        %s246 = smul.addr %s242, 3
        %s247 = sadd.s32 %s245, %s246
        %s248 = smul.addr %s240, 12
        %s249 = sadd.s32 %s247, %s248
        %s250 = smul.addr %s249, 8
        %s251 = scalar_lea.vmem %s1, %s250
        %s252 = smul.u32 4, %s22
        %s253 = smul.u32 4, %s22
        %s254 = smul.u32 2, %s23
        %v255 = vld [vmem:[%s235] sm:$0xff]
        %v256 = vld [vmem:[%s235 + $0x8] sm:$0xff]
        %v257 = vld [vmem:[%s235 + $0x10] sm:$0xff]
        %v258 = vld [vmem:[%s235 + $0x18] sm:$0xff]
        %v259 = vld [vmem:[%s235 + $0x20] sm:$0xff]
        %v260 = vld [vmem:[%s235 + $0x28] sm:$0xff]
        %v261 = vld [vmem:[%s235 + $0x30] sm:$0xff]
        %v262 = vld [vmem:[%s235 + $0x38] sm:$0xff]
        %v263 = vld [vmem:[%s251] sm:$0xff]
        %v264 = vld [vmem:[%s251 + $0x8] sm:$0xff]
        %v265 = vld [vmem:[%s251 + $0x10] sm:$0x3]
        %v266 = vld [vmem:[%s251 + $0x18] sm:$0xff]
        %v267 = vld [vmem:[%s251 + $0x20] sm:$0xff]
        %v268 = vld [vmem:[%s251 + $0x28] sm:$0x3]
        %v269 = vld [vmem:[%s251 + $0x30] sm:$0xff]
        %v270 = vld [vmem:[%s251 + $0x38] sm:$0xff]
        %v271 = vld [vmem:[%s251 + $0x40] sm:$0x3]
        %v272 = vld [vmem:[%s251 + $0x48] sm:$0xff]
        %v273 = vld [vmem:[%s251 + $0x50] sm:$0xff]
        %v274 = vld [vmem:[%s251 + $0x58] sm:$0x3]
        %v275 = vlaneseq
        %v276 = vshrl.u32 %v275, 7
        %v277 = vadd.s32 %v276, 8
        %s278 = smul.u32 %s23, 16
        %v279 = vstv %s278
        %v280 = vadd.s32 %v276, %v279
        %v281 = vadd.s32 %v277, %v279
        %v282 = vlaneseq
        %v283 = vand.u32 %v282, 127
        %v284 = vadd.s32 %v280, 4294967295
        %v285 = vadd.s32 %v281, 4294967295
        %vm286 = vcmp.ge.s32.totalorder %v284, 0
        %vm287 = vcmp.ge.s32.totalorder %v285, 0
        %vm288 = vcmp.lt.s32.totalorder %v284, 16
        %vm289 = vcmp.lt.s32.totalorder %v285, 16
        %vm290 = vmand %vm286, %vm288
        %vm291 = vmand %vm287, %vm289
        %vm292 = vcmp.ge.s32.totalorder %v280, 0
        %vm293 = vcmp.ge.s32.totalorder %v281, 0
        %vm294 = vcmp.lt.s32.totalorder %v280, 16
        %vm295 = vcmp.lt.s32.totalorder %v281, 16
        %vm296 = vmand %vm292, %vm294
        %vm297 = vmand %vm293, %vm295
        %v298 = vadd.s32 %v280, 1
        %v299 = vadd.s32 %v281, 1
        %vm300 = vcmp.ge.s32.totalorder %v298, 0
        %vm301 = vcmp.ge.s32.totalorder %v299, 0
        %vm302 = vcmp.lt.s32.totalorder %v298, 16
        %vm303 = vcmp.lt.s32.totalorder %v299, 16
        %vm304 = vmand %vm300, %vm302
        %vm305 = vmand %vm301, %vm303
        %v306 = vadd.s32 %v283, 4294967295
        %vm307 = vcmp.ge.s32.totalorder %v306, 0
        %vm308 = vcmp.lt.s32.totalorder %v306, 16
        %vm309 = vmand %vm307, %vm308
        %vm310 = vcmp.ge.s32.totalorder %v283, 0
        %vm311 = vcmp.lt.s32.totalorder %v283, 16
        %vm312 = vmand %vm310, %vm311
        %v313 = vadd.s32 %v283, 1
        %vm314 = vcmp.ge.s32.totalorder %v313, 0
        %vm315 = vcmp.lt.s32.totalorder %v313, 16
        %vm316 = vmand %vm314, %vm315
        %v317 = vmul.f32 %v255, %v255
        %v318 = vmul.f32 %v256, %v256
        %v319 = vmul.f32 %v257, %v257
        %v320 = vmul.f32 %v258, %v258
        %v321 = vmul.f32 %v259, %v259
        %v322 = vmul.f32 %v260, %v260
        %v323 = vmul.f32 %v261, %v261
        %v324 = vmul.f32 %v262, %v262
        %vm325 = vcmask 130048
        %v326 = vsel %vm325, %v317, 0.0
        %v327 = vsel %vm325, %v319, 0.0
        %v328 = vadd.f32 %v326, %v327
        %v329 = vsel %vm325, %v321, 0.0
        %v330 = vadd.f32 %v328, %v329
        %v331 = vsel %vm325, %v323, 0.0
        %v332 = vadd.f32 %v330, %v331
        %v333 = vsel %vm325, %v318, 0.0
        %v334 = vsel %vm325, %v320, 0.0
        %v335 = vadd.f32 %v333, %v334
        %v336 = vsel %vm325, %v322, 0.0
        %v337 = vadd.f32 %v335, %v336
        %v338 = vsel %vm325, %v324, 0.0
        %v339 = vadd.f32 %v337, %v338
        %v340 = vmul.f32 %v263, %v263
        %v341 = vmul.f32 %v264, %v264
        %v342 = vmul.f32 %v265, %v265
        %v343 = vmul.f32 %v266, %v266
        %v344 = vmul.f32 %v267, %v267
        %v345 = vmul.f32 %v268, %v268
        %v346 = vmul.f32 %v269, %v269
        %v347 = vmul.f32 %v270, %v270
        %v348 = vmul.f32 %v271, %v271
        %v349 = vmul.f32 %v272, %v272
        %v350 = vmul.f32 %v273, %v273
        %v351 = vmul.f32 %v274, %v274
        %vm352 = vcmask 146432
        %v353 = vsel %vm352, %v340, 0.0
        %v354 = vsel %vm352, %v343, 0.0
        %v355 = vadd.f32 %v353, %v354
        %v356 = vsel %vm352, %v346, 0.0
        %v357 = vadd.f32 %v355, %v356
        %v358 = vsel %vm352, %v349, 0.0
        %v359 = vadd.f32 %v357, %v358
        %v360 = vsel %vm352, %v341, 0.0
        %v361 = vsel %vm352, %v344, 0.0
        %v362 = vadd.f32 %v360, %v361
        %v363 = vsel %vm352, %v347, 0.0
        %v364 = vadd.f32 %v362, %v363
        %v365 = vsel %vm352, %v350, 0.0
        %v366 = vadd.f32 %v364, %v365
        %vm367 = vcmask 140288
        %v368 = vsel %vm367, %v342, 0.0
        %v369 = vsel %vm367, %v345, 0.0
        %v370 = vadd.f32 %v368, %v369
        %v371 = vsel %vm367, %v348, 0.0
        %v372 = vadd.f32 %v370, %v371
        %v373 = vsel %vm367, %v351, 0.0
        %v374 = vadd.f32 %v372, %v373
        %vm387 = vcmask 1045504
        %v388 = vrot.slane %v263, 2
        %v389 = vrot.slane %v264, 2
        %v390 = vsel %vm387, %v388, %v389
        %v391 = vrot.slane %v265, 2
        %v392 = vsel %vm387, %v389, %v391
        %v393 = vrot.slane %v266, 2
        %v394 = vrot.slane %v267, 2
        %v395 = vsel %vm387, %v393, %v394
        %v396 = vrot.slane %v268, 2
        %v397 = vsel %vm387, %v394, %v396
        %v398 = vrot.slane %v269, 2
        %v399 = vrot.slane %v270, 2
        %v400 = vsel %vm387, %v398, %v399
        %v401 = vrot.slane %v271, 2
        %v402 = vsel %vm387, %v399, %v401
        %v403 = vrot.slane %v272, 2
        %v404 = vrot.slane %v273, 2
        %v405 = vsel %vm387, %v403, %v404
        %v406 = vrot.slane %v274, 2
        %v407 = vsel %vm387, %v404, %v406
        %408 = vrot.lane.b32.xlu0 %v390, 126
        %v409 = vpop.permute.xlu0 %408
        %410 = vrot.lane.b32.xlu0 %v392, 126
        %v411 = vpop.permute.xlu0 %410
        %412 = vrot.lane.b32.xlu0 %v395, 126
        %v413 = vpop.permute.xlu0 %412
        %414 = vrot.lane.b32.xlu0 %v397, 126
        %v415 = vpop.permute.xlu0 %414
        %416 = vrot.lane.b32.xlu0 %v400, 126
        %v417 = vpop.permute.xlu0 %416
        %418 = vrot.lane.b32.xlu0 %v402, 126
        %v419 = vpop.permute.xlu0 %418
        %420 = vrot.lane.b32.xlu0 %v405, 126
        %v421 = vpop.permute.xlu0 %420
        %422 = vrot.lane.b32.xlu0 %v407, 126
        %v423 = vpop.permute.xlu0 %422
        %v432 = vmul.f32 %v255, %v409
        %v433 = vmul.f32 %v256, %v411
        %v434 = vmul.f32 %v257, %v413
        %v435 = vmul.f32 %v258, %v415
        %v436 = vmul.f32 %v259, %v417
        %v437 = vmul.f32 %v260, %v419
        %v438 = vmul.f32 %v261, %v421
        %v439 = vmul.f32 %v262, %v423
        %v440 = vsel %vm325, %v432, 0.0
        %v441 = vsel %vm325, %v434, 0.0
        %v442 = vadd.f32 %v440, %v441
        %v443 = vsel %vm325, %v436, 0.0
        %v444 = vadd.f32 %v442, %v443
        %v445 = vsel %vm325, %v438, 0.0
        %v446 = vadd.f32 %v444, %v445
        %v447 = vsel %vm325, %v433, 0.0
        %v448 = vsel %vm325, %v435, 0.0
        %v449 = vadd.f32 %v447, %v448
        %v450 = vsel %vm325, %v437, 0.0
        %v451 = vadd.f32 %v449, %v450
        %v452 = vsel %vm325, %v439, 0.0
        %v453 = vadd.f32 %v451, %v452
        %v457 = vrot.slane %v359, 2
        %v458 = vrot.slane %v366, 2
        %v459 = vsel %vm387, %v457, %v458
        %v460 = vrot.slane %v374, 2
        %v461 = vsel %vm387, %v458, %v460
        %462 = vrot.lane.b32.xlu0 %v459, 126
        %v463 = vpop.permute.xlu0 %462
        %464 = vrot.lane.b32.xlu0 %v461, 126
        %v465 = vpop.permute.xlu0 %464
        %v468 = vadd.f32 %v332, %v463
        %v469 = vadd.f32 %v339, %v465
        %v470 = vmul.f32 %v446, 2.0
        %v471 = vmul.f32 %v453, 2.0
        %v472 = vsub.f32 %v468, %v470
        %v473 = vsub.f32 %v469, %v471
        %v474 = vmul.f32 %v472, -0.5
        %v475 = vmul.f32 %v473, -0.5
        %v476 = vmul.f32 %v474, 1.442695
        %v477 = vpow.pop %v476
        %v478 = vmul.f32 %v475, 1.442695
        %v479 = vpow.pop %v478
        %vm480 = vmand %vm304, %vm316
        %vm481 = vmand %vm305, %vm316
        %v482 = vsel %vm480, %v477, 0.0
        %v483 = vsel %vm481, %v479, 0.0
        %484 = vrot.lane.b32.xlu0 %v390, 127
        %v485 = vpop.permute.xlu0 %484
        %486 = vrot.lane.b32.xlu0 %v392, 127
        %v487 = vpop.permute.xlu0 %486
        %488 = vrot.lane.b32.xlu0 %v395, 127
        %v489 = vpop.permute.xlu0 %488
        %490 = vrot.lane.b32.xlu0 %v397, 127
        %v491 = vpop.permute.xlu0 %490
        %492 = vrot.lane.b32.xlu0 %v400, 127
        %v493 = vpop.permute.xlu0 %492
        %494 = vrot.lane.b32.xlu0 %v402, 127
        %v495 = vpop.permute.xlu0 %494
        %496 = vrot.lane.b32.xlu0 %v405, 127
        %v497 = vpop.permute.xlu0 %496
        %498 = vrot.lane.b32.xlu0 %v407, 127
        %v499 = vpop.permute.xlu0 %498
        %v508 = vmul.f32 %v255, %v485
        %v509 = vmul.f32 %v256, %v487
        %v510 = vmul.f32 %v257, %v489
        %v511 = vmul.f32 %v258, %v491
        %v512 = vmul.f32 %v259, %v493
        %v513 = vmul.f32 %v260, %v495
        %v514 = vmul.f32 %v261, %v497
        %v515 = vmul.f32 %v262, %v499
        %v516 = vsel %vm325, %v508, 0.0
        %v517 = vsel %vm325, %v510, 0.0
        %v518 = vadd.f32 %v516, %v517
        %v519 = vsel %vm325, %v512, 0.0
        %v520 = vadd.f32 %v518, %v519
        %v521 = vsel %vm325, %v514, 0.0
        %v522 = vadd.f32 %v520, %v521
        %v523 = vsel %vm325, %v509, 0.0
        %v524 = vsel %vm325, %v511, 0.0
        %v525 = vadd.f32 %v523, %v524
        %v526 = vsel %vm325, %v513, 0.0
        %v527 = vadd.f32 %v525, %v526
        %v528 = vsel %vm325, %v515, 0.0
        %v529 = vadd.f32 %v527, %v528
        %530 = vrot.lane.b32.xlu0 %v459, 127
        %v531 = vpop.permute.xlu0 %530
        %532 = vrot.lane.b32.xlu0 %v461, 127
        %v533 = vpop.permute.xlu0 %532
        %v536 = vadd.f32 %v332, %v531
        %v537 = vadd.f32 %v339, %v533
        %v538 = vmul.f32 %v522, 2.0
        %v539 = vmul.f32 %v529, 2.0
        %v540 = vsub.f32 %v536, %v538
        %v541 = vsub.f32 %v537, %v539
        %v542 = vmul.f32 %v540, -0.5
        %v543 = vmul.f32 %v541, -0.5
        %v544 = vmul.f32 %v542, 1.442695
        %v545 = vpow.pop %v544
        %v546 = vmul.f32 %v543, 1.442695
        %v547 = vpow.pop %v546
        %vm548 = vmand %vm304, %vm312
        %vm549 = vmand %vm305, %vm312
        %v550 = vsel %vm548, %v545, 0.0
        %v551 = vsel %vm549, %v547, 0.0
        %v552 = vadd.f32 %v482, %v550
        %v553 = vadd.f32 %v483, %v551
        %v562 = vmul.f32 %v255, %v390
        %v563 = vmul.f32 %v256, %v392
        %v564 = vmul.f32 %v257, %v395
        %v565 = vmul.f32 %v258, %v397
        %v566 = vmul.f32 %v259, %v400
        %v567 = vmul.f32 %v260, %v402
        %v568 = vmul.f32 %v261, %v405
        %v569 = vmul.f32 %v262, %v407
        %v570 = vsel %vm325, %v562, 0.0
        %v571 = vsel %vm325, %v564, 0.0
        %v572 = vadd.f32 %v570, %v571
        %v573 = vsel %vm325, %v566, 0.0
        %v574 = vadd.f32 %v572, %v573
        %v575 = vsel %vm325, %v568, 0.0
        %v576 = vadd.f32 %v574, %v575
        %v577 = vsel %vm325, %v563, 0.0
        %v578 = vsel %vm325, %v565, 0.0
        %v579 = vadd.f32 %v577, %v578
        %v580 = vsel %vm325, %v567, 0.0
        %v581 = vadd.f32 %v579, %v580
        %v582 = vsel %vm325, %v569, 0.0
        %v583 = vadd.f32 %v581, %v582
        %v586 = vadd.f32 %v332, %v459
        %v587 = vadd.f32 %v339, %v461
        %v588 = vmul.f32 %v576, 2.0
        %v589 = vmul.f32 %v583, 2.0
        %v590 = vsub.f32 %v586, %v588
        %v591 = vsub.f32 %v587, %v589
        %v592 = vmul.f32 %v590, -0.5
        %v593 = vmul.f32 %v591, -0.5
        %v594 = vmul.f32 %v592, 1.442695
        %v595 = vpow.pop %v594
        %v596 = vmul.f32 %v593, 1.442695
        %v597 = vpow.pop %v596
        %vm598 = vmand %vm304, %vm309
        %vm599 = vmand %vm305, %vm309
        %v600 = vsel %vm598, %v595, 0.0
        %v601 = vsel %vm599, %v597, 0.0
        %v602 = vadd.f32 %v552, %v600
        %v603 = vadd.f32 %v553, %v601
        %vm604 = vcmask 1046528
        %v605 = vrot.slane %v263, 1
        %v606 = vrot.slane %v264, 1
        %v607 = vsel %vm604, %v605, %v606
        %v608 = vrot.slane %v265, 1
        %v609 = vsel %vm604, %v606, %v608
        %v610 = vrot.slane %v266, 1
        %v611 = vrot.slane %v267, 1
        %v612 = vsel %vm604, %v610, %v611
        %v613 = vrot.slane %v268, 1
        %v614 = vsel %vm604, %v611, %v613
        %v615 = vrot.slane %v269, 1
        %v616 = vrot.slane %v270, 1
        %v617 = vsel %vm604, %v615, %v616
        %v618 = vrot.slane %v271, 1
        %v619 = vsel %vm604, %v616, %v618
        %v620 = vrot.slane %v272, 1
        %v621 = vrot.slane %v273, 1
        %v622 = vsel %vm604, %v620, %v621
        %v623 = vrot.slane %v274, 1
        %v624 = vsel %vm604, %v621, %v623
        %625 = vrot.lane.b32.xlu0 %v607, 126
        %v626 = vpop.permute.xlu0 %625
        %627 = vrot.lane.b32.xlu0 %v609, 126
        %v628 = vpop.permute.xlu0 %627
        %629 = vrot.lane.b32.xlu0 %v612, 126
        %v630 = vpop.permute.xlu0 %629
        %631 = vrot.lane.b32.xlu0 %v614, 126
        %v632 = vpop.permute.xlu0 %631
        %633 = vrot.lane.b32.xlu0 %v617, 126
        %v634 = vpop.permute.xlu0 %633
        %635 = vrot.lane.b32.xlu0 %v619, 126
        %v636 = vpop.permute.xlu0 %635
        %637 = vrot.lane.b32.xlu0 %v622, 126
        %v638 = vpop.permute.xlu0 %637
        %639 = vrot.lane.b32.xlu0 %v624, 126
        %v640 = vpop.permute.xlu0 %639
        %v649 = vmul.f32 %v255, %v626
        %v650 = vmul.f32 %v256, %v628
        %v651 = vmul.f32 %v257, %v630
        %v652 = vmul.f32 %v258, %v632
        %v653 = vmul.f32 %v259, %v634
        %v654 = vmul.f32 %v260, %v636
        %v655 = vmul.f32 %v261, %v638
        %v656 = vmul.f32 %v262, %v640
        %v657 = vsel %vm325, %v649, 0.0
        %v658 = vsel %vm325, %v651, 0.0
        %v659 = vadd.f32 %v657, %v658
        %v660 = vsel %vm325, %v653, 0.0
        %v661 = vadd.f32 %v659, %v660
        %v662 = vsel %vm325, %v655, 0.0
        %v663 = vadd.f32 %v661, %v662
        %v664 = vsel %vm325, %v650, 0.0
        %v665 = vsel %vm325, %v652, 0.0
        %v666 = vadd.f32 %v664, %v665
        %v667 = vsel %vm325, %v654, 0.0
        %v668 = vadd.f32 %v666, %v667
        %v669 = vsel %vm325, %v656, 0.0
        %v670 = vadd.f32 %v668, %v669
        %v671 = vrot.slane %v359, 1
        %v672 = vrot.slane %v366, 1
        %v673 = vsel %vm604, %v671, %v672
        %v674 = vrot.slane %v374, 1
        %v675 = vsel %vm604, %v672, %v674
        %676 = vrot.lane.b32.xlu0 %v673, 126
        %v677 = vpop.permute.xlu0 %676
        %678 = vrot.lane.b32.xlu0 %v675, 126
        %v679 = vpop.permute.xlu0 %678
        %v682 = vadd.f32 %v332, %v677
        %v683 = vadd.f32 %v339, %v679
        %v684 = vmul.f32 %v663, 2.0
        %v685 = vmul.f32 %v670, 2.0
        %v686 = vsub.f32 %v682, %v684
        %v687 = vsub.f32 %v683, %v685
        %v688 = vmul.f32 %v686, -0.5
        %v689 = vmul.f32 %v687, -0.5
        %v690 = vmul.f32 %v688, 1.442695
        %v691 = vpow.pop %v690
        %v692 = vmul.f32 %v689, 1.442695
        %v693 = vpow.pop %v692
        %vm694 = vmand %vm296, %vm316
        %vm695 = vmand %vm297, %vm316
        %v696 = vsel %vm694, %v691, 0.0
        %v697 = vsel %vm695, %v693, 0.0
        %v698 = vadd.f32 %v602, %v696
        %v699 = vadd.f32 %v603, %v697
        %700 = vrot.lane.b32.xlu0 %v607, 127
        %v701 = vpop.permute.xlu0 %700
        %702 = vrot.lane.b32.xlu0 %v609, 127
        %v703 = vpop.permute.xlu0 %702
        %704 = vrot.lane.b32.xlu0 %v612, 127
        %v705 = vpop.permute.xlu0 %704
        %706 = vrot.lane.b32.xlu0 %v614, 127
        %v707 = vpop.permute.xlu0 %706
        %708 = vrot.lane.b32.xlu0 %v617, 127
        %v709 = vpop.permute.xlu0 %708
        %710 = vrot.lane.b32.xlu0 %v619, 127
        %v711 = vpop.permute.xlu0 %710
        %712 = vrot.lane.b32.xlu0 %v622, 127
        %v713 = vpop.permute.xlu0 %712
        %714 = vrot.lane.b32.xlu0 %v624, 127
        %v715 = vpop.permute.xlu0 %714
        %v724 = vmul.f32 %v255, %v701
        %v725 = vmul.f32 %v256, %v703
        %v726 = vmul.f32 %v257, %v705
        %v727 = vmul.f32 %v258, %v707
        %v728 = vmul.f32 %v259, %v709
        %v729 = vmul.f32 %v260, %v711
        %v730 = vmul.f32 %v261, %v713
        %v731 = vmul.f32 %v262, %v715
        %v732 = vsel %vm325, %v724, 0.0
        %v733 = vsel %vm325, %v726, 0.0
        %v734 = vadd.f32 %v732, %v733
        %v735 = vsel %vm325, %v728, 0.0
        %v736 = vadd.f32 %v734, %v735
        %v737 = vsel %vm325, %v730, 0.0
        %v738 = vadd.f32 %v736, %v737
        %v739 = vsel %vm325, %v725, 0.0
        %v740 = vsel %vm325, %v727, 0.0
        %v741 = vadd.f32 %v739, %v740
        %v742 = vsel %vm325, %v729, 0.0
        %v743 = vadd.f32 %v741, %v742
        %v744 = vsel %vm325, %v731, 0.0
        %v745 = vadd.f32 %v743, %v744
        %746 = vrot.lane.b32.xlu0 %v673, 127
        %v747 = vpop.permute.xlu0 %746
        %748 = vrot.lane.b32.xlu0 %v675, 127
        %v749 = vpop.permute.xlu0 %748
        %v752 = vadd.f32 %v332, %v747
        %v753 = vadd.f32 %v339, %v749
        %v754 = vmul.f32 %v738, 2.0
        %v755 = vmul.f32 %v745, 2.0
        %v756 = vsub.f32 %v752, %v754
        %v757 = vsub.f32 %v753, %v755
        %v758 = vmul.f32 %v756, -0.5
        %v759 = vmul.f32 %v757, -0.5
        %v760 = vmul.f32 %v758, 1.442695
        %v761 = vpow.pop %v760
        %v762 = vmul.f32 %v759, 1.442695
        %v763 = vpow.pop %v762
        %v764 = vadd.f32 %v698, %v761
        %v765 = vadd.f32 %v699, %v763
        %v774 = vmul.f32 %v255, %v607
        %v775 = vmul.f32 %v256, %v609
        %v776 = vmul.f32 %v257, %v612
        %v777 = vmul.f32 %v258, %v614
        %v778 = vmul.f32 %v259, %v617
        %v779 = vmul.f32 %v260, %v619
        %v780 = vmul.f32 %v261, %v622
        %v781 = vmul.f32 %v262, %v624
        %v782 = vsel %vm325, %v774, 0.0
        %v783 = vsel %vm325, %v776, 0.0
        %v784 = vadd.f32 %v782, %v783
        %v785 = vsel %vm325, %v778, 0.0
        %v786 = vadd.f32 %v784, %v785
        %v787 = vsel %vm325, %v780, 0.0
        %v788 = vadd.f32 %v786, %v787
        %v789 = vsel %vm325, %v775, 0.0
        %v790 = vsel %vm325, %v777, 0.0
        %v791 = vadd.f32 %v789, %v790
        %v792 = vsel %vm325, %v779, 0.0
        %v793 = vadd.f32 %v791, %v792
        %v794 = vsel %vm325, %v781, 0.0
        %v795 = vadd.f32 %v793, %v794
        %v798 = vadd.f32 %v332, %v673
        %v799 = vadd.f32 %v339, %v675
        %v800 = vmul.f32 %v788, 2.0
        %v801 = vmul.f32 %v795, 2.0
        %v802 = vsub.f32 %v798, %v800
        %v803 = vsub.f32 %v799, %v801
        %v804 = vmul.f32 %v802, -0.5
        %v805 = vmul.f32 %v803, -0.5
        %v806 = vmul.f32 %v804, 1.442695
        %v807 = vpow.pop %v806
        %v808 = vmul.f32 %v805, 1.442695
        %v809 = vpow.pop %v808
        %vm810 = vmand %vm296, %vm309
        %vm811 = vmand %vm297, %vm309
        %v812 = vsel %vm810, %v807, 0.0
        %v813 = vsel %vm811, %v809, 0.0
        %v814 = vadd.f32 %v764, %v812
        %v815 = vadd.f32 %v765, %v813
        %816 = vrot.lane.b32.xlu0 %v263, 126
        %v817 = vpop.permute.xlu0 %816
        %818 = vrot.lane.b32.xlu0 %v264, 126
        %v819 = vpop.permute.xlu0 %818
        %820 = vrot.lane.b32.xlu0 %v266, 126
        %v821 = vpop.permute.xlu0 %820
        %822 = vrot.lane.b32.xlu0 %v267, 126
        %v823 = vpop.permute.xlu0 %822
        %824 = vrot.lane.b32.xlu0 %v269, 126
        %v825 = vpop.permute.xlu0 %824
        %826 = vrot.lane.b32.xlu0 %v270, 126
        %v827 = vpop.permute.xlu0 %826
        %828 = vrot.lane.b32.xlu0 %v272, 126
        %v829 = vpop.permute.xlu0 %828
        %830 = vrot.lane.b32.xlu0 %v273, 126
        %v831 = vpop.permute.xlu0 %830
        %v840 = vmul.f32 %v255, %v817
        %v841 = vmul.f32 %v256, %v819
        %v842 = vmul.f32 %v257, %v821
        %v843 = vmul.f32 %v258, %v823
        %v844 = vmul.f32 %v259, %v825
        %v845 = vmul.f32 %v260, %v827
        %v846 = vmul.f32 %v261, %v829
        %v847 = vmul.f32 %v262, %v831
        %v848 = vsel %vm325, %v840, 0.0
        %v849 = vsel %vm325, %v842, 0.0
        %v850 = vadd.f32 %v848, %v849
        %v851 = vsel %vm325, %v844, 0.0
        %v852 = vadd.f32 %v850, %v851
        %v853 = vsel %vm325, %v846, 0.0
        %v854 = vadd.f32 %v852, %v853
        %v855 = vsel %vm325, %v841, 0.0
        %v856 = vsel %vm325, %v843, 0.0
        %v857 = vadd.f32 %v855, %v856
        %v858 = vsel %vm325, %v845, 0.0
        %v859 = vadd.f32 %v857, %v858
        %v860 = vsel %vm325, %v847, 0.0
        %v861 = vadd.f32 %v859, %v860
        %862 = vrot.lane.b32.xlu0 %v359, 126
        %v863 = vpop.permute.xlu0 %862
        %864 = vrot.lane.b32.xlu0 %v366, 126
        %v865 = vpop.permute.xlu0 %864
        %v868 = vadd.f32 %v332, %v863
        %v869 = vadd.f32 %v339, %v865
        %v870 = vmul.f32 %v854, 2.0
        %v871 = vmul.f32 %v861, 2.0
        %v872 = vsub.f32 %v868, %v870
        %v873 = vsub.f32 %v869, %v871
        %v874 = vmul.f32 %v872, -0.5
        %v875 = vmul.f32 %v873, -0.5
        %v876 = vmul.f32 %v874, 1.442695
        %v877 = vpow.pop %v876
        %v878 = vmul.f32 %v875, 1.442695
        %v879 = vpow.pop %v878
        %vm880 = vmand %vm290, %vm316
        %vm881 = vmand %vm291, %vm316
        %v882 = vsel %vm880, %v877, 0.0
        %v883 = vsel %vm881, %v879, 0.0
        %v884 = vadd.f32 %v814, %v882
        %v885 = vadd.f32 %v815, %v883
        %886 = vrot.lane.b32.xlu0 %v263, 127
        %v887 = vpop.permute.xlu0 %886
        %888 = vrot.lane.b32.xlu0 %v264, 127
        %v889 = vpop.permute.xlu0 %888
        %890 = vrot.lane.b32.xlu0 %v266, 127
        %v891 = vpop.permute.xlu0 %890
        %892 = vrot.lane.b32.xlu0 %v267, 127
        %v893 = vpop.permute.xlu0 %892
        %894 = vrot.lane.b32.xlu0 %v269, 127
        %v895 = vpop.permute.xlu0 %894
        %896 = vrot.lane.b32.xlu0 %v270, 127
        %v897 = vpop.permute.xlu0 %896
        %898 = vrot.lane.b32.xlu0 %v272, 127
        %v899 = vpop.permute.xlu0 %898
        %900 = vrot.lane.b32.xlu0 %v273, 127
        %v901 = vpop.permute.xlu0 %900
        %v910 = vmul.f32 %v255, %v887
        %v911 = vmul.f32 %v256, %v889
        %v912 = vmul.f32 %v257, %v891
        %v913 = vmul.f32 %v258, %v893
        %v914 = vmul.f32 %v259, %v895
        %v915 = vmul.f32 %v260, %v897
        %v916 = vmul.f32 %v261, %v899
        %v917 = vmul.f32 %v262, %v901
        %v918 = vsel %vm325, %v910, 0.0
        %v919 = vsel %vm325, %v912, 0.0
        %v920 = vadd.f32 %v918, %v919
        %v921 = vsel %vm325, %v914, 0.0
        %v922 = vadd.f32 %v920, %v921
        %v923 = vsel %vm325, %v916, 0.0
        %v924 = vadd.f32 %v922, %v923
        %v925 = vsel %vm325, %v911, 0.0
        %v926 = vsel %vm325, %v913, 0.0
        %v927 = vadd.f32 %v925, %v926
        %v928 = vsel %vm325, %v915, 0.0
        %v929 = vadd.f32 %v927, %v928
        %v930 = vsel %vm325, %v917, 0.0
        %v931 = vadd.f32 %v929, %v930
        %932 = vrot.lane.b32.xlu0 %v359, 127
        %v933 = vpop.permute.xlu0 %932
        %934 = vrot.lane.b32.xlu0 %v366, 127
        %v935 = vpop.permute.xlu0 %934
        %v938 = vadd.f32 %v332, %v933
        %v939 = vadd.f32 %v339, %v935
        %v940 = vmul.f32 %v924, 2.0
        %v941 = vmul.f32 %v931, 2.0
        %v942 = vsub.f32 %v938, %v940
        %v943 = vsub.f32 %v939, %v941
        %v944 = vmul.f32 %v942, -0.5
        %v945 = vmul.f32 %v943, -0.5
        %v946 = vmul.f32 %v944, 1.442695
        %v947 = vpow.pop %v946
        %v948 = vmul.f32 %v945, 1.442695
        %v949 = vpow.pop %v948
        %vm950 = vmand %vm290, %vm312
        %vm951 = vmand %vm291, %vm312
        %v952 = vsel %vm950, %v947, 0.0
        %v953 = vsel %vm951, %v949, 0.0
        %v954 = vadd.f32 %v884, %v952
        %v955 = vadd.f32 %v885, %v953
        %v956 = vmul.f32 %v255, %v263
        %v957 = vmul.f32 %v256, %v264
        %v958 = vmul.f32 %v257, %v266
        %v959 = vmul.f32 %v258, %v267
        %v960 = vmul.f32 %v259, %v269
        %v961 = vmul.f32 %v260, %v270
        %v962 = vmul.f32 %v261, %v272
        %v963 = vmul.f32 %v262, %v273
        %v964 = vsel %vm325, %v956, 0.0
        %v965 = vsel %vm325, %v958, 0.0
        %v966 = vadd.f32 %v964, %v965
        %v967 = vsel %vm325, %v960, 0.0
        %v968 = vadd.f32 %v966, %v967
        %v969 = vsel %vm325, %v962, 0.0
        %v970 = vadd.f32 %v968, %v969
        %v971 = vsel %vm325, %v957, 0.0
        %v972 = vsel %vm325, %v959, 0.0
        %v973 = vadd.f32 %v971, %v972
        %v974 = vsel %vm325, %v961, 0.0
        %v975 = vadd.f32 %v973, %v974
        %v976 = vsel %vm325, %v963, 0.0
        %v977 = vadd.f32 %v975, %v976
        %v978 = vadd.f32 %v332, %v359
        %v979 = vadd.f32 %v339, %v366
        %v980 = vmul.f32 %v970, 2.0
        %v981 = vmul.f32 %v977, 2.0
        %v982 = vsub.f32 %v978, %v980
        %v983 = vsub.f32 %v979, %v981
        %v984 = vmul.f32 %v982, -0.5
        %v985 = vmul.f32 %v983, -0.5
        %v986 = vmul.f32 %v984, 1.442695
        %v987 = vpow.pop %v986
        %v988 = vmul.f32 %v985, 1.442695
        %v989 = vpow.pop %v988
        %vm990 = vmand %vm290, %vm309
        %vm991 = vmand %vm291, %vm309
        %v992 = vsel %vm990, %v987, 0.0
        %v993 = vsel %vm991, %v989, 0.0
        %v994 = vadd.f32 %v954, %v992
        %v995 = vadd.f32 %v955, %v993
        %v996 = vmul.f32 %v255, %v994
        %v997 = vmul.f32 %v256, %v995
        %v998 = vmul.f32 %v257, %v994
        %v999 = vmul.f32 %v258, %v995
        %v1000 = vmul.f32 %v259, %v994
        %v1001 = vmul.f32 %v260, %v995
        %v1002 = vmul.f32 %v261, %v994
        %v1003 = vmul.f32 %v262, %v995
        %1004 = vst.msk [vmem:[%s221] sm:$0xff] %vm325, %v996
        %1005 = vst.msk [vmem:[%s221 + $0x8] sm:$0xff] %vm325, %v997
        %1006 = vst.msk [vmem:[%s221 + $0x10] sm:$0xff] %vm325, %v998
        %1007 = vst.msk [vmem:[%s221 + $0x18] sm:$0xff] %vm325, %v999
        %1008 = vst.msk [vmem:[%s221 + $0x20] sm:$0xff] %vm325, %v1000
        %1009 = vst.msk [vmem:[%s221 + $0x28] sm:$0xff] %vm325, %v1001
        %1010 = vst.msk [vmem:[%s221 + $0x30] sm:$0xff] %vm325, %v1002
        %1011 = vst.msk [vmem:[%s221 + $0x38] sm:$0xff] %vm325, %v1003
        %s1012 = sand.u32 %s107, 1
        %s1013 = scalar_lea.sflag [#allocation3], %s1012
        %s1014 = sand.u32 %s107, 1
        %s1015 = smul.addr %s1014, 64
        %s1016 = scalar_lea.vmem [#allocation2], %s1015
        // Predicated region
        $region29: #{tpu_custom_call.1} parent=27 // pred_check
          %p1017 = pneg %p117
        $region30: #{tpu_custom_call.1} parent=27 // pred_check_branch
          %1019 = sbr.rel (%p1017) target = $region32
        $region31: #{tpu_custom_call.1} parent=27 // pred_region
          %s1020 = smul.u32 4, %s22
          %s1021 = smul.u32 2, %s23
          %s1023 = ssub.s32 1024, 1024
          %1024 = vsyncadd %s1013, %s1023
          %s1025 = smul.addr %s1020, 2
          %s1026 = sadd.s32 %s1021, %s1025
          %s1027 = smul.addr %s21, 8
          %s1028 = sadd.s32 %s1026, %s1027
          %s1029 = smul.addr %s1028, 128
          %s1030 = scalar_lea.hbm %s2, %s1029
          %s1031 = sshll.u32 %s1016, 4
          %s1032 = int_to_ptr.vmem [resolvable:$true] %s1031
          %1037 = dma.vmem_to_hbm [thread:$0]  %s1032, 1024, %s1030, %s1013, 128, 128, 8
        $region32: #{tpu_custom_call.1} parent=27 // pred_fallthru
          _
      $region28: #{tpu_custom_call.1} parent=5 // pred_fallthru
        _
      %p1038 = scmp.le.s32.totalorder 2, %s11
      // Predicated region
      $region33: #{tpu_custom_call.1} parent=5 // pred_check
        %p1039 = pneg %p1038
      $region34: #{tpu_custom_call.1} parent=5 // pred_check_branch
        %1041 = sbr.rel (%p1039) target = $region36
      $region35: #{tpu_custom_call.1} parent=5 // pred_region
        %s1042 = ssub.s32 %s11, 2
        // Predicated region
        $region37: #{tpu_custom_call.1} parent=35 // pred_check
          %p1043 = pneg %p123
        $region38: #{tpu_custom_call.1} parent=35 // pred_check_branch
          %1045 = sbr.rel (%p1043) target = $region40
        $region39: #{tpu_custom_call.1} parent=35 // pred_region
          %s1046 = sand.u32 %s108, 1
          %s1047 = scalar_lea.sflag [#allocation3], %s1046
          %s1048 = sand.u32 %s108, 1
          %s1049 = smul.addr %s1048, 64
          %s1050 = scalar_lea.vmem [#allocation2], %s1049
          %1051 = dma.done %s1047, 1024
        $region40: #{tpu_custom_call.1} parent=35 // pred_fallthru
          _
      $region36: #{tpu_custom_call.1} parent=5 // pred_fallthru
        _
    $region6: #{tpu_custom_call.1} parent=1 // loop_footer
      %s15 = sadd.s32 1, %s11
    $region7: #{tpu_custom_call.1} parent=1 // loop_footer_branch
      %10 = sbr.rel target = $region3
    $region8: #{tpu_custom_call.1} parent=1 // loop_exit
      _
    %1052 = vsyncpa [#allocation3], 1
    %s1053 = scalar_lea.sflag [#allocation3], 1
    %1054 = vsyncpa %s1053, 1

</llo_original>
